<compile_context>
chip_gen: v5e
topology: v5e:2x2
jax: 0.10.0
libtpu: 0.0.40
codegen_flags: <defaults>
</compile_context>

<pallas_src>
import jax
import jax.numpy as jnp
from jax.experimental import pallas as pl
from jax.experimental.pallas import tpu as pltpu


def _assemble_ctx(ctx_positive, ctx_negative, P, dtype):
    """Glue: mirrors the torch parameter assembly (pad is PREPENDED, then cat)."""
    n_ctx, D = ctx_positive.shape[1], ctx_positive.shape[2]
    if ctx_negative.shape[0] == 0:
        ctx = jnp.broadcast_to(ctx_positive, (P, n_ctx, D))
    else:
        diff = n_ctx - ctx_negative.shape[1]
        if diff > 0:
            # torch: cat([additional_rows(zeros), ctx_negative], dim=1)
            pad = jnp.zeros((ctx_negative.shape[0], diff, D), ctx_negative.dtype)
            ctx_negative = jnp.concatenate([pad, ctx_negative], axis=1)
        ctx = jnp.concatenate([ctx_positive, ctx_negative], axis=0)
    return ctx.astype(dtype)


def nega_prompt_forward(ctx_positive, ctx_negative, token_prefix, token_suffix,
                        class_indices=None, block_cls=8):
    """Pallas implementation of NegaPromptLearner.forward (generic-context path)."""
    if class_indices is not None:
        # modify_to_ori: pure gather over the class axis.  ctx is class-invariant
        # in the generic-context path, so only prefix/suffix need re-indexing.
        idx = jnp.asarray(class_indices)
        token_prefix = token_prefix[idx]
        token_suffix = token_suffix[idx]

    n_cls, P, _, D = token_prefix.shape
    n_ctx = ctx_positive.shape[1]
    S_suf = token_suffix.shape[2]
    S = 1 + n_ctx + S_suf
    dtype = token_prefix.dtype

    # --- glue: parameter assembly (matches the torch code exactly) ---
    ctx = _assemble_ctx(ctx_positive, ctx_negative, P, dtype)   # (P, n_ctx, D)

    # Classes per grid step: largest divisor of n_cls not exceeding block_cls.
    # (Keeps every block full-size -> no partial/masked blocks to worry about.)
    tc = max(d for d in range(1, min(block_cls, n_cls) + 1) if n_cls % d == 0)
    grid = (n_cls // tc,)

    # --- hot path: broadcast ctx over classes + concat along the sequence axis ---
    def kernel(prefix_ref, ctx_ref, suffix_ref, out_ref):
        # prefix_ref : (tc, P, 1,     D)
        # ctx_ref    : (P,  n_ctx,    D)   -- VMEM-resident (constant index_map)
        # suffix_ref : (tc, P, S_suf, D)
        # out_ref    : (tc, P, S,     D)
        out_ref[:, :, 0:1, :] = prefix_ref[...]
        ctx_block = jnp.broadcast_to(ctx_ref[...][None], (tc, P, n_ctx, D))
        out_ref[:, :, 1:1 + n_ctx, :] = ctx_block.astype(out_ref.dtype)
        out_ref[:, :, 1 + n_ctx:, :] = suffix_ref[...]

    return pl.pallas_call(
        kernel,
        out_shape=jax.ShapeDtypeStruct((n_cls, P, S, D), dtype),
        grid_spec=pl.GridSpec(
            grid=grid,
            in_specs=[
                pl.BlockSpec((tc, P, 1, D), lambda i: (i, 0, 0, 0)),
                # ctx is shared across all classes: constant block index -> the
                # pipeline fetches it once and keeps it resident in VMEM.
                pl.BlockSpec((P, n_ctx, D), lambda i: (0, 0, 0)),
                pl.BlockSpec((tc, P, S_suf, D), lambda i: (i, 0, 0, 0)),
            ],
            out_specs=pl.BlockSpec((tc, P, S, D), lambda i: (i, 0, 0, 0)),
        ),
        compiler_params=pltpu.CompilerParams(
            dimension_semantics=("parallel",)),
    )(token_prefix, ctx, token_suffix)


def reference_forward(ctx_positive, ctx_negative, token_prefix, token_suffix):
    """Pure-JAX reference with the exact torch semantics."""
    n_cls, P, _, D = token_prefix.shape
    n_ctx = ctx_positive.shape[1]
    ctx = _assemble_ctx(ctx_positive, ctx_negative, P, token_prefix.dtype)
    ctx_b = jnp.broadcast_to(ctx[None], (n_cls, P, n_ctx, D))
    return jnp.concatenate([token_prefix, ctx_b, token_suffix], axis=2)


if __name__ == "__main__":
    key = jax.random.PRNGKey(0)

    def run_case(name, n_cls, n_nega_ctx, n_ctx, n_ctx_neg, ctx_dim, suffix_len,
                 dtype, case_key):
        P = 1 + n_nega_ctx
        seq_len = 1 + n_ctx + suffix_len
        k1, k2, k3, k4 = jax.random.split(case_key, 4)

        # nn.init.normal_(ctx_vectors, std=0.02)
        ctx_positive = (0.02 * jax.random.normal(k1, (1, n_ctx, ctx_dim))).astype(dtype)
        if n_nega_ctx > 0:
            ctx_negative = (0.02 * jax.random.normal(
                k2, (n_nega_ctx, n_ctx_neg, ctx_dim))).astype(dtype)
        else:
            ctx_negative = jnp.zeros((0,), dtype)   # torch.empty(0)

        # stand-ins for the frozen CLIP token-embedding slices (registered buffers)
        token_prefix = jax.random.normal(k3, (n_cls, P, 1, ctx_dim)).astype(dtype)
        token_suffix = jax.random.normal(k4, (n_cls, P, suffix_len, ctx_dim)).astype(dtype)

        out = nega_prompt_forward(ctx_positive, ctx_negative, token_prefix, token_suffix)
        out = jax.block_until_ready(out)
        ref = reference_forward(ctx_positive, ctx_negative, token_prefix, token_suffix)
        assert out.shape == (n_cls, P, seq_len, ctx_dim), (name, out.shape)
        assert jnp.array_equal(out, ref), f"mismatch vs. reference in case '{name}'"

    k0, k1_, k2_ = jax.random.split(key, 3)

    # main generic-context case: 16 classes, 8 per block -> 2 parallel grid steps
    run_case("generic", n_cls=16, n_nega_ctx=2, n_ctx=8, n_ctx_neg=8,
             ctx_dim=128, suffix_len=7, dtype=jnp.bfloat16, case_key=k0)
    # shorter negative ctx -> exercises the zero-pad (prepend) branch
    run_case("padded_negative", n_cls=16, n_nega_ctx=2, n_ctx=8, n_ctx_neg=5,
             ctx_dim=128, suffix_len=7, dtype=jnp.bfloat16, case_key=k1_)
    # empty negative ctx -> P == 1 path (n_cls=12 -> block of 6, still 2 grid steps)
    run_case("no_negative", n_cls=12, n_nega_ctx=0, n_ctx=8, n_ctx_neg=0,
             ctx_dim=128, suffix_len=7, dtype=jnp.bfloat16, case_key=k2_)

    print("KERNEL_OK")
</pallas_src>

<mosaic_0001>
module attributes {stable_mosaic.version = 11 : i64} {
  func.func @kernel(%arg0: i32, %arg1: memref<8x3x1x128xbf16, #tpu.memory_space<vmem>>, %arg2: memref<3x8x128xbf16, #tpu.memory_space<vmem>>, %arg3: memref<8x3x7x128xbf16, #tpu.memory_space<vmem>>, %arg4: memref<8x3x16x128xbf16, #tpu.memory_space<vmem>>) attributes {dimension_semantics = [#tpu.dimension_semantics<parallel>], iteration_bounds = array<i64: 2>, scalar_prefetch = 0 : i64, scratch_operands = 0 : i64, tpu.core_type = #tpu.core_type<tc>, window_params = [{transform_indices = @transform_0, window_bounds = array<i64: 8, 3, 1, 128>}, {pipeline_mode = #tpu.pipeline_mode<synchronous>, transform_indices = @transform_1, window_bounds = array<i64: 3, 8, 128>}, {transform_indices = @transform_2, window_bounds = array<i64: 8, 3, 7, 128>}, {transform_indices = @transform_3, window_bounds = array<i64: 8, 3, 16, 128>}]} {
    %c0 = arith.constant 0 : index
    %c0_0 = arith.constant 0 : index
    %c0_1 = arith.constant 0 : index
    %c0_2 = arith.constant 0 : index
    %0 = vector.load %arg1[%c0, %c0_0, %c0_1, %c0_2] : memref<8x3x1x128xbf16, #tpu.memory_space<vmem>>, vector<8x3x1x128xbf16>
    %c0_3 = arith.constant 0 : index
    %c0_4 = arith.constant 0 : index
    %c0_5 = arith.constant 0 : index
    %c0_6 = arith.constant 0 : index
    %1 = vector.load %arg4[%c0_3, %c0_4, %c0_5, %c0_6] : memref<8x3x16x128xbf16, #tpu.memory_space<vmem>>, vector<8x3x1x128xbf16>
    tpu.vector_store %arg4[%c0_3, %c0_4, %c0_5, %c0_6], %0 {strides = array<i32>} : memref<8x3x16x128xbf16, #tpu.memory_space<vmem>>, vector<8x3x1x128xbf16>,
    %c0_7 = arith.constant 0 : index
    %c0_8 = arith.constant 0 : index
    %c0_9 = arith.constant 0 : index
    %2 = vector.load %arg2[%c0_7, %c0_8, %c0_9] : memref<3x8x128xbf16, #tpu.memory_space<vmem>>, vector<3x8x128xbf16>
    %3 = vector.shape_cast %2 : vector<3x8x128xbf16> to vector<1x3x8x128xbf16>
    %4 = vector.shape_cast %3 : vector<1x3x8x128xbf16> to vector<1x3x8x128xbf16>
    %5 = vector.broadcast %4 : vector<1x3x8x128xbf16> to vector<8x3x8x128xbf16>
    %c0_10 = arith.constant 0 : index
    %c0_11 = arith.constant 0 : index
    %c1 = arith.constant 1 : index
    %c0_12 = arith.constant 0 : index
    %6 = vector.load %arg4[%c0_10, %c0_11, %c1, %c0_12] : memref<8x3x16x128xbf16, #tpu.memory_space<vmem>>, vector<8x3x8x128xbf16>
    tpu.vector_store %arg4[%c0_10, %c0_11, %c1, %c0_12], %5 {strides = array<i32>} : memref<8x3x16x128xbf16, #tpu.memory_space<vmem>>, vector<8x3x8x128xbf16>,
    %c0_13 = arith.constant 0 : index
    %c0_14 = arith.constant 0 : index
    %c0_15 = arith.constant 0 : index
    %c0_16 = arith.constant 0 : index
    %7 = vector.load %arg3[%c0_13, %c0_14, %c0_15, %c0_16] : memref<8x3x7x128xbf16, #tpu.memory_space<vmem>>, vector<8x3x7x128xbf16>
    %c0_17 = arith.constant 0 : index
    %c0_18 = arith.constant 0 : index
    %c9 = arith.constant 9 : index
    %c0_19 = arith.constant 0 : index
    %8 = vector.load %arg4[%c0_17, %c0_18, %c9, %c0_19] : memref<8x3x16x128xbf16, #tpu.memory_space<vmem>>, vector<8x3x7x128xbf16>
    tpu.vector_store %arg4[%c0_17, %c0_18, %c9, %c0_19], %7 {strides = array<i32>} : memref<8x3x16x128xbf16, #tpu.memory_space<vmem>>, vector<8x3x7x128xbf16>,
    return
  }
  func.func @transform_0(%arg0: i32) -> (i32, i32, i32, i32) {
    %c0_i32 = arith.constant 0 : i32
    %c0_i32_0 = arith.constant 0 : i32
    %c0_i32_1 = arith.constant 0 : i32
    %c0_i32_2 = arith.constant 0 : i32
    return %arg0, %c0_i32, %c0_i32_0, %c0_i32_1 : i32, i32, i32, i32
  }
  func.func @transform_1(%arg0: i32) -> (i32, i32, i32) {
    %c0_i32 = arith.constant 0 : i32
    %c0_i32_0 = arith.constant 0 : i32
    %c0_i32_1 = arith.constant 0 : i32
    %c0_i32_2 = arith.constant 0 : i32
    return %c0_i32, %c0_i32_0, %c0_i32_1 : i32, i32, i32
  }
  func.func @transform_2(%arg0: i32) -> (i32, i32, i32, i32) {
    %c0_i32 = arith.constant 0 : i32
    %c0_i32_0 = arith.constant 0 : i32
    %c0_i32_1 = arith.constant 0 : i32
    %c0_i32_2 = arith.constant 0 : i32
    return %arg0, %c0_i32, %c0_i32_0, %c0_i32_1 : i32, i32, i32, i32
  }
  func.func @transform_3(%arg0: i32) -> (i32, i32, i32, i32) {
    %c0_i32 = arith.constant 0 : i32
    %c0_i32_0 = arith.constant 0 : i32
    %c0_i32_1 = arith.constant 0 : i32
    %c0_i32_2 = arith.constant 0 : i32
    return %arg0, %c0_i32, %c0_i32_0, %c0_i32_1 : i32, i32, i32, i32
  }
}

</mosaic_0001>

<llo_original>
// kernel: tpu_custom_call.1
$region0: #{tpu_custom_call.1}
  #allocation0 [shape = 'u32[]', space=smem, size = 0x4, offset = 0x4, fixed_abs, tag = 'smem constant byte address 0x4 - core index']
  #allocation1 [shape = 'u32[72,128]{1,0:T(1,128)}', space=vmem, size = 0x9000, scoped, tag = 'internal scratch']
  %s0 = inlined_call_operand.vmem [shape: bf16[16,3,1,128], index: 0, kind: input, shape index: {}]
  %s1 = inlined_call_operand.vmem [shape: bf16[3,8,128], index: 1, kind: input, shape index: {}]
  %s2 = inlined_call_operand.vmem [shape: bf16[16,3,7,128], index: 2, kind: input, shape index: {}]
  %s3 = inlined_call_operand.hbm [shape: bf16[16,3,16,128], index: 3, kind: output, shape index: {}]
  %s4 = sld [smem:[#allocation0]]
  $region45: #{tpu_custom_call.1} parent=0
    _
  %s6 = ssub.s32 1, %s4
  %s7 = scalar_select 0, %s6, %s4
  $region1: #{tpu_custom_call.1} parent=0
    #allocation2 [shape = 'u8[196608]{0}', space=vmem, size = 0x30000, scoped, tag = 'output window, operand 0']
    #allocation3 [shape = 's32[2]{0}', space=sflag, size = 0x8, scoped, tag = 'scoped memory for tpu_custom_call.1']
    %8 = vsyncpa [#allocation3], 0
    %s9 = scalar_lea.sflag [#allocation3], 1
    %10 = vsyncpa %s9, 0
    loop: start=0, step=1, limit=4
    $region2: #{tpu_custom_call.1} parent=1 // loop_pre_header
      _
    $region3: #{tpu_custom_call.1} parent=1 // loop_header
      %s12 = sphi 0, %s16
      %p13 = scmp.ge.s32.totalorder %s12, 4
      %s22 = sphi 0, %s24
      %s25 = sphi 0, %s22
      %s26 = sphi 0, %s25
      %s42 = sphi 0, %s26
      %s46 = sphi 0, %s46
      %s48 = sphi 0, %s46
      %s49 = sphi 0, %s48
      %s63 = sphi 0, %s49
      %s69 = sphi 0, %s71
      %s72 = sphi 0, %s69
      %s73 = sphi 0, %s72
      %s89 = sphi 0, %s73
      %s95 = sphi 0, %s97
      %s98 = sphi 0, %s95
      %s99 = sphi 0, %s98
      %s115 = sphi 0, %s99
    $region4: #{tpu_custom_call.1} parent=1 // loop_header_branch
      %15 = sbr.rel (%p13) target = $region8
    $region5: #{tpu_custom_call.1} parent=1 // loop_body
      %s17 = ssub.s32 %s12, 1
      %s18 = ssub.s32 %s12, 2
      %s19 = sadd.s32 %s12, 1
      %s20 = ssub.s32 %s12, %s19
      %p21 = scmp.eq.s32.totalorder %s20, 0
      %s23 = sadd.s32 %s22, 1
      %s24 = scalar_select %p21, %s22, %s23
      %p27 = pneg %p21
      %p28 = scmp.eq.s32.totalorder %s12, 1
      %p29 = por %p27, %p28
      %p30 = scmp.ne.s32.totalorder %s22, %s25
      %p31 = scmp.eq.s32.totalorder %s12, 0
      %p32 = por %p30, %p31
      %p33 = scmp.ne.s32.totalorder %s22, %s25
      %p34 = scmp.eq.s32.totalorder %s17, 1
      %p35 = por %p33, %p34
      %p36 = scmp.ne.s32.totalorder %s25, %s26
      %p37 = scmp.eq.s32.totalorder %s17, 0
      %p38 = por %p36, %p37
      %p39 = scmp.ne.s32.totalorder %s25, %s26
      %p40 = scmp.eq.s32.totalorder %s18, 1
      %p41 = por %p39, %p40
      %p43 = scmp.ne.s32.totalorder %s26, %s42
      %p44 = scmp.eq.s32.totalorder %s18, 0
      %p45 = por %p43, %p44
      %s47 = sadd.s32 %s46, 1
      %p50 = scmp.eq.s32.totalorder %s12, 1
      %p51 = scmp.ne.s32.totalorder %s46, %s48
      %p52 = scmp.eq.s32.totalorder %s12, 0
      %p53 = por %p51, %p52
      %p54 = scmp.ne.s32.totalorder %s46, %s48
      %p55 = scmp.eq.s32.totalorder %s17, 1
      %p56 = por %p54, %p55
      %p57 = scmp.ne.s32.totalorder %s48, %s49
      %p58 = scmp.eq.s32.totalorder %s17, 0
      %p59 = por %p57, %p58
      %p60 = scmp.ne.s32.totalorder %s48, %s49
      %p61 = scmp.eq.s32.totalorder %s18, 1
      %p62 = por %p60, %p61
      %p64 = scmp.ne.s32.totalorder %s49, %s63
      %p65 = scmp.eq.s32.totalorder %s18, 0
      %p66 = por %p64, %p65
      %s67 = ssub.s32 %s12, %s19
      %p68 = scmp.eq.s32.totalorder %s67, 0
      %s70 = sadd.s32 %s69, 1
      %s71 = scalar_select %p68, %s69, %s70
      %p74 = pneg %p68
      %p75 = scmp.eq.s32.totalorder %s12, 1
      %p76 = por %p74, %p75
      %p77 = scmp.ne.s32.totalorder %s69, %s72
      %p78 = scmp.eq.s32.totalorder %s12, 0
      %p79 = por %p77, %p78
      %p80 = scmp.ne.s32.totalorder %s69, %s72
      %p81 = scmp.eq.s32.totalorder %s17, 1
      %p82 = por %p80, %p81
      %p83 = scmp.ne.s32.totalorder %s72, %s73
      %p84 = scmp.eq.s32.totalorder %s17, 0
      %p85 = por %p83, %p84
      %p86 = scmp.ne.s32.totalorder %s72, %s73
      %p87 = scmp.eq.s32.totalorder %s18, 1
      %p88 = por %p86, %p87
      %p90 = scmp.ne.s32.totalorder %s73, %s89
      %p91 = scmp.eq.s32.totalorder %s18, 0
      %p92 = por %p90, %p91
      %s93 = ssub.s32 %s12, %s19
      %p94 = scmp.eq.s32.totalorder %s93, 0
      %s96 = sadd.s32 %s95, 1
      %s97 = scalar_select %p94, %s95, %s96
      %p100 = pneg %p94
      %p101 = scmp.eq.s32.totalorder %s12, 1
      %p102 = por %p100, %p101
      %p103 = scmp.ne.s32.totalorder %s95, %s98
      %p104 = scmp.eq.s32.totalorder %s12, 0
      %p105 = por %p103, %p104
      %p106 = scmp.ne.s32.totalorder %s95, %s98
      %p107 = scmp.eq.s32.totalorder %s17, 1
      %p108 = por %p106, %p107
      %p109 = scmp.ne.s32.totalorder %s98, %s99
      %p110 = scmp.eq.s32.totalorder %s17, 0
      %p111 = por %p109, %p110
      %p112 = scmp.ne.s32.totalorder %s98, %s99
      %p113 = scmp.eq.s32.totalorder %s18, 1
      %p114 = por %p112, %p113
      %p116 = scmp.ne.s32.totalorder %s99, %s115
      %p117 = scmp.eq.s32.totalorder %s18, 0
      %p118 = por %p116, %p117
      %p119 = scmp.le.s32.totalorder 1, %s12
      %p120 = scmp.lt.s32.totalorder %s12, 3
      %p121 = pnand %p119, %p120
      %p122 = pneg %p121
      // Predicated region
      $region9: #{tpu_custom_call.1} parent=5 // pred_check
        _
      $region10: #{tpu_custom_call.1} parent=5 // pred_check_branch
        %124 = sbr.rel (%p121) target = $region12
      $region11: #{tpu_custom_call.1} parent=5 // pred_region
        %s125 = ssub.s32 %s12, 1
        // Predicated region
        $region13: #{tpu_custom_call.1} parent=11 // pred_check
          %p126 = pneg %p59
        $region14: #{tpu_custom_call.1} parent=11 // pred_check_branch
          %128 = sbr.rel (%p126) target = $region16
        $region15: #{tpu_custom_call.1} parent=11 // pred_region
          _
        $region16: #{tpu_custom_call.1} parent=11 // pred_fallthru
          _
      $region12: #{tpu_custom_call.1} parent=5 // pred_fallthru
        _
      %p129 = scmp.lt.s32.totalorder %s12, 2
      // Predicated region
      $region17: #{tpu_custom_call.1} parent=5 // pred_check
        %p130 = pneg %p129
      $region18: #{tpu_custom_call.1} parent=5 // pred_check_branch
        %132 = sbr.rel (%p130) target = $region20
      $region19: #{tpu_custom_call.1} parent=5 // pred_region
        // Predicated region
        $region21: #{tpu_custom_call.1} parent=19 // pred_check
          %p133 = pneg %p32
        $region22: #{tpu_custom_call.1} parent=19 // pred_check_branch
          %135 = sbr.rel (%p133) target = $region24
        $region23: #{tpu_custom_call.1} parent=19 // pred_region
          %s136 = smul.u32 8, %s12
          %p137 = scmp.lt.s32.totalorder %s136, 15
          %s138 = scalar_select %p137, %s136, 15
          %s139 = smul.addr %s138, 3
          %s140 = scalar_lea.vmem %s0, %s139
          %s141 = smul.u32 8, %s12
        $region24: #{tpu_custom_call.1} parent=19 // pred_fallthru
          _
        // Predicated region
        $region25: #{tpu_custom_call.1} parent=19 // pred_check
          %p142 = pneg %p79
        $region26: #{tpu_custom_call.1} parent=19 // pred_check_branch
          %144 = sbr.rel (%p142) target = $region28
        $region27: #{tpu_custom_call.1} parent=19 // pred_region
          %s145 = smul.u32 8, %s12
          %p146 = scmp.lt.s32.totalorder %s145, 15
          %s147 = scalar_select %p146, %s145, 15
          %s148 = smul.addr %s147, 3
          %s149 = smul.addr %s148, 4
          %s150 = scalar_lea.vmem %s2, %s149
          %s151 = smul.u32 8, %s12
        $region28: #{tpu_custom_call.1} parent=19 // pred_fallthru
          _
      $region20: #{tpu_custom_call.1} parent=5 // pred_fallthru
        _
      %p152 = scmp.le.s32.totalorder 1, %s12
      %p153 = scmp.lt.s32.totalorder %s12, 3
      %p154 = pnand %p152, %p153
      %p155 = pneg %p154
      // Predicated region
      $region29: #{tpu_custom_call.1} parent=5 // pred_check
        _
      $region30: #{tpu_custom_call.1} parent=5 // pred_check_branch
        %157 = sbr.rel (%p154) target = $region32
      $region31: #{tpu_custom_call.1} parent=5 // pred_region
        %s158 = ssub.s32 %s12, 1
        %s159 = smul.u32 8, %s17
        %p160 = scmp.lt.s32.totalorder %s159, 15
        %s161 = scalar_select %p160, %s159, 15
        %s162 = smul.addr %s161, 3
        %s163 = scalar_lea.vmem %s0, %s162
        %p164 = pneg %p38
        %p165 = pneg %p35
        %p166 = pneg %p59
        %p167 = pneg %p56
        %s168 = smul.u32 8, %s17
        %p169 = scmp.lt.s32.totalorder %s168, 15
        %s170 = scalar_select %p169, %s168, 15
        %s171 = smul.addr %s170, 3
        %s172 = smul.addr %s171, 4
        %s173 = scalar_lea.vmem %s2, %s172
        %p174 = pneg %p85
        %p175 = pneg %p82
        %p176 = pneg %p111
        %p177 = pneg %p108
        %s178 = sand.u32 %s98, 1
        %s179 = scalar_lea.sflag [#allocation3], %s178
        %s180 = sand.u32 %s98, 1
        %s181 = smul.addr %s180, 192
        %s182 = scalar_lea.vmem [#allocation2], %s181
        %s183 = smul.u32 8, %s17
        %p184 = scmp.lt.s32.totalorder %s183, 15
        %s185 = scalar_select %p184, %s183, 15
        %s186 = smul.addr %s185, 3
        %s187 = scalar_lea.vmem %s0, %s186
        %s188 = smul.u32 8, %s17
        %s189 = smul.u32 8, %s17
        %p190 = scmp.lt.s32.totalorder %s189, 15
        %s191 = scalar_select %p190, %s189, 15
        %s192 = smul.addr %s191, 3
        %s193 = smul.addr %s192, 4
        %s194 = scalar_lea.vmem %s2, %s193
        %s195 = smul.u32 8, %s17
        %s196 = smul.u32 8, %s17
        %v197 = vld [vmem:[%s187] sm:$0x1]
        %v198 = vld [vmem:[%s187 + $0x1] sm:$0x1]
        %v199 = vld [vmem:[%s187 + $0x2] sm:$0x1]
        %v200 = vld [vmem:[%s187 + $0x3] sm:$0x1]
        %v201 = vld [vmem:[%s187 + $0x4] sm:$0x1]
        %v202 = vld [vmem:[%s187 + $0x5] sm:$0x1]
        %v203 = vld [vmem:[%s187 + $0x6] sm:$0x1]
        %v204 = vld [vmem:[%s187 + $0x7] sm:$0x1]
        %v205 = vld [vmem:[%s187 + $0x8] sm:$0x1]
        %v206 = vld [vmem:[%s187 + $0x9] sm:$0x1]
        %v207 = vld [vmem:[%s187 + $0xa] sm:$0x1]
        %v208 = vld [vmem:[%s187 + $0xb] sm:$0x1]
        %v209 = vld [vmem:[%s187 + $0xc] sm:$0x1]
        %v210 = vld [vmem:[%s187 + $0xd] sm:$0x1]
        %v211 = vld [vmem:[%s187 + $0xe] sm:$0x1]
        %v212 = vld [vmem:[%s187 + $0xf] sm:$0x1]
        %v213 = vld [vmem:[%s187 + $0x10] sm:$0x1]
        %v214 = vld [vmem:[%s187 + $0x11] sm:$0x1]
        %v215 = vld [vmem:[%s187 + $0x12] sm:$0x1]
        %v216 = vld [vmem:[%s187 + $0x13] sm:$0x1]
        %v217 = vld [vmem:[%s187 + $0x14] sm:$0x1]
        %v218 = vld [vmem:[%s187 + $0x15] sm:$0x1]
        %v219 = vld [vmem:[%s187 + $0x16] sm:$0x1]
        %v220 = vld [vmem:[%s187 + $0x17] sm:$0x1]
        %vm221 = vcmask 1040384
        %vm222 = vsmask.f32 256
        %vm223 = vmand %vm221, %vm222
        %v224 = vld [vmem:[%s182] sm:$0x1]
        %v225 = vsel %vm223, %v197, %v224
        %226 = vst [vmem:[%s182] sm:$0x1] %v225
        %v227 = vld [vmem:[%s182 + $0x8] sm:$0x1]
        %v228 = vsel %vm223, %v198, %v227
        %229 = vst [vmem:[%s182 + $0x8] sm:$0x1] %v228
        %v230 = vld [vmem:[%s182 + $0x10] sm:$0x1]
        %v231 = vsel %vm223, %v199, %v230
        %232 = vst [vmem:[%s182 + $0x10] sm:$0x1] %v231
        %v233 = vld [vmem:[%s182 + $0x18] sm:$0x1]
        %v234 = vsel %vm223, %v200, %v233
        %235 = vst [vmem:[%s182 + $0x18] sm:$0x1] %v234
        %v236 = vld [vmem:[%s182 + $0x20] sm:$0x1]
        %v237 = vsel %vm223, %v201, %v236
        %238 = vst [vmem:[%s182 + $0x20] sm:$0x1] %v237
        %v239 = vld [vmem:[%s182 + $0x28] sm:$0x1]
        %v240 = vsel %vm223, %v202, %v239
        %241 = vst [vmem:[%s182 + $0x28] sm:$0x1] %v240
        %v242 = vld [vmem:[%s182 + $0x30] sm:$0x1]
        %v243 = vsel %vm223, %v203, %v242
        %244 = vst [vmem:[%s182 + $0x30] sm:$0x1] %v243
        %v245 = vld [vmem:[%s182 + $0x38] sm:$0x1]
        %v246 = vsel %vm223, %v204, %v245
        %247 = vst [vmem:[%s182 + $0x38] sm:$0x1] %v246
        %v248 = vld [vmem:[%s182 + $0x40] sm:$0x1]
        %v249 = vsel %vm223, %v205, %v248
        %250 = vst [vmem:[%s182 + $0x40] sm:$0x1] %v249
        %v251 = vld [vmem:[%s182 + $0x48] sm:$0x1]
        %v252 = vsel %vm223, %v206, %v251
        %253 = vst [vmem:[%s182 + $0x48] sm:$0x1] %v252
        %v254 = vld [vmem:[%s182 + $0x50] sm:$0x1]
        %v255 = vsel %vm223, %v207, %v254
        %256 = vst [vmem:[%s182 + $0x50] sm:$0x1] %v255
        %v257 = vld [vmem:[%s182 + $0x58] sm:$0x1]
        %v258 = vsel %vm223, %v208, %v257
        %259 = vst [vmem:[%s182 + $0x58] sm:$0x1] %v258
        %v260 = vld [vmem:[%s182 + $0x60] sm:$0x1]
        %v261 = vsel %vm223, %v209, %v260
        %262 = vst [vmem:[%s182 + $0x60] sm:$0x1] %v261
        %v263 = vld [vmem:[%s182 + $0x68] sm:$0x1]
        %v264 = vsel %vm223, %v210, %v263
        %265 = vst [vmem:[%s182 + $0x68] sm:$0x1] %v264
        %v266 = vld [vmem:[%s182 + $0x70] sm:$0x1]
        %v267 = vsel %vm223, %v211, %v266
        %268 = vst [vmem:[%s182 + $0x70] sm:$0x1] %v267
        %v269 = vld [vmem:[%s182 + $0x78] sm:$0x1]
        %v270 = vsel %vm223, %v212, %v269
        %271 = vst [vmem:[%s182 + $0x78] sm:$0x1] %v270
        %v272 = vld [vmem:[%s182 + $0x80] sm:$0x1]
        %v273 = vsel %vm223, %v213, %v272
        %274 = vst [vmem:[%s182 + $0x80] sm:$0x1] %v273
        %v275 = vld [vmem:[%s182 + $0x88] sm:$0x1]
        %v276 = vsel %vm223, %v214, %v275
        %277 = vst [vmem:[%s182 + $0x88] sm:$0x1] %v276
        %v278 = vld [vmem:[%s182 + $0x90] sm:$0x1]
        %v279 = vsel %vm223, %v215, %v278
        %280 = vst [vmem:[%s182 + $0x90] sm:$0x1] %v279
        %v281 = vld [vmem:[%s182 + $0x98] sm:$0x1]
        %v282 = vsel %vm223, %v216, %v281
        %283 = vst [vmem:[%s182 + $0x98] sm:$0x1] %v282
        %v284 = vld [vmem:[%s182 + $0xa0] sm:$0x1]
        %v285 = vsel %vm223, %v217, %v284
        %286 = vst [vmem:[%s182 + $0xa0] sm:$0x1] %v285
        %v287 = vld [vmem:[%s182 + $0xa8] sm:$0x1]
        %v288 = vsel %vm223, %v218, %v287
        %289 = vst [vmem:[%s182 + $0xa8] sm:$0x1] %v288
        %v290 = vld [vmem:[%s182 + $0xb0] sm:$0x1]
        %v291 = vsel %vm223, %v219, %v290
        %292 = vst [vmem:[%s182 + $0xb0] sm:$0x1] %v291
        %v293 = vld [vmem:[%s182 + $0xb8] sm:$0x1]
        %v294 = vsel %vm223, %v220, %v293
        %295 = vst [vmem:[%s182 + $0xb8] sm:$0x1] %v294
        %v296 = vld [vmem:[%s1] sm:$0xf]
        %v297 = vld [vmem:[%s1 + $0x4] sm:$0xf]
        %v298 = vld [vmem:[%s1 + $0x8] sm:$0xf]
        %v300 = vshrl.u32 %v296, 16
        %v302 = vrot.slane %v300, 7
        %v303 = vshll.u32 %v296, 16
        %v305 = vor.u32 %v302, %v303
        %v306 = vrot.slane %v302, 4
        %v308 = vshrl.u32 %v297, 16
        %v310 = vrot.slane %v308, 7
        %v311 = vshll.u32 %v297, 16
        %v313 = vor.u32 %v310, %v311
        %v314 = vrot.slane %v310, 4
        %v316 = vshrl.u32 %v298, 16
        %v318 = vrot.slane %v316, 7
        %v319 = vshll.u32 %v298, 16
        %v321 = vor.u32 %v318, %v319
        %v322 = vrot.slane %v318, 4
        %vm329 = vcmask 1043456
        %vm330 = vsmask.f32 7938
        %vm331 = vmand %vm329, %vm330
        %v332 = vld [vmem:[%s182] sm:$0xf]
        %v333 = vsel %vm331, %v305, %v332
        %334 = vst [vmem:[%s182] sm:$0xf] %v333
        %v335 = vld [vmem:[%s182 + $0x4] sm:$0x1]
        %v336 = vsel %vm223, %v306, %v335
        %337 = vst [vmem:[%s182 + $0x4] sm:$0x1] %v336
        %v338 = vld [vmem:[%s182 + $0x8] sm:$0xf]
        %v339 = vsel %vm331, %v313, %v338
        %340 = vst [vmem:[%s182 + $0x8] sm:$0xf] %v339
        %v341 = vld [vmem:[%s182 + $0xc] sm:$0x1]
        %v342 = vsel %vm223, %v314, %v341
        %343 = vst [vmem:[%s182 + $0xc] sm:$0x1] %v342
        %v344 = vld [vmem:[%s182 + $0x10] sm:$0xf]
        %v345 = vsel %vm331, %v321, %v344
        %346 = vst [vmem:[%s182 + $0x10] sm:$0xf] %v345
        %v347 = vld [vmem:[%s182 + $0x14] sm:$0x1]
        %v348 = vsel %vm223, %v322, %v347
        %349 = vst [vmem:[%s182 + $0x14] sm:$0x1] %v348
        %v350 = vld [vmem:[%s182 + $0x18] sm:$0xf]
        %v351 = vsel %vm331, %v305, %v350
        %352 = vst [vmem:[%s182 + $0x18] sm:$0xf] %v351
        %v353 = vld [vmem:[%s182 + $0x1c] sm:$0x1]
        %v354 = vsel %vm223, %v306, %v353
        %355 = vst [vmem:[%s182 + $0x1c] sm:$0x1] %v354
        %v356 = vld [vmem:[%s182 + $0x20] sm:$0xf]
        %v357 = vsel %vm331, %v313, %v356
        %358 = vst [vmem:[%s182 + $0x20] sm:$0xf] %v357
        %v359 = vld [vmem:[%s182 + $0x24] sm:$0x1]
        %v360 = vsel %vm223, %v314, %v359
        %361 = vst [vmem:[%s182 + $0x24] sm:$0x1] %v360
        %v362 = vld [vmem:[%s182 + $0x28] sm:$0xf]
        %v363 = vsel %vm331, %v321, %v362
        %364 = vst [vmem:[%s182 + $0x28] sm:$0xf] %v363
        %v365 = vld [vmem:[%s182 + $0x2c] sm:$0x1]
        %v366 = vsel %vm223, %v322, %v365
        %367 = vst [vmem:[%s182 + $0x2c] sm:$0x1] %v366
        %v368 = vld [vmem:[%s182 + $0x30] sm:$0xf]
        %v369 = vsel %vm331, %v305, %v368
        %370 = vst [vmem:[%s182 + $0x30] sm:$0xf] %v369
        %v371 = vld [vmem:[%s182 + $0x34] sm:$0x1]
        %v372 = vsel %vm223, %v306, %v371
        %373 = vst [vmem:[%s182 + $0x34] sm:$0x1] %v372
        %v374 = vld [vmem:[%s182 + $0x38] sm:$0xf]
        %v375 = vsel %vm331, %v313, %v374
        %376 = vst [vmem:[%s182 + $0x38] sm:$0xf] %v375
        %v377 = vld [vmem:[%s182 + $0x3c] sm:$0x1]
        %v378 = vsel %vm223, %v314, %v377
        %379 = vst [vmem:[%s182 + $0x3c] sm:$0x1] %v378
        %v380 = vld [vmem:[%s182 + $0x40] sm:$0xf]
        %v381 = vsel %vm331, %v321, %v380
        %382 = vst [vmem:[%s182 + $0x40] sm:$0xf] %v381
        %v383 = vld [vmem:[%s182 + $0x44] sm:$0x1]
        %v384 = vsel %vm223, %v322, %v383
        %385 = vst [vmem:[%s182 + $0x44] sm:$0x1] %v384
        %v386 = vld [vmem:[%s182 + $0x48] sm:$0xf]
        %v387 = vsel %vm331, %v305, %v386
        %388 = vst [vmem:[%s182 + $0x48] sm:$0xf] %v387
        %v389 = vld [vmem:[%s182 + $0x4c] sm:$0x1]
        %v390 = vsel %vm223, %v306, %v389
        %391 = vst [vmem:[%s182 + $0x4c] sm:$0x1] %v390
        %v392 = vld [vmem:[%s182 + $0x50] sm:$0xf]
        %v393 = vsel %vm331, %v313, %v392
        %394 = vst [vmem:[%s182 + $0x50] sm:$0xf] %v393
        %v395 = vld [vmem:[%s182 + $0x54] sm:$0x1]
        %v396 = vsel %vm223, %v314, %v395
        %397 = vst [vmem:[%s182 + $0x54] sm:$0x1] %v396
        %v398 = vld [vmem:[%s182 + $0x58] sm:$0xf]
        %v399 = vsel %vm331, %v321, %v398
        %400 = vst [vmem:[%s182 + $0x58] sm:$0xf] %v399
        %v401 = vld [vmem:[%s182 + $0x5c] sm:$0x1]
        %v402 = vsel %vm223, %v322, %v401
        %403 = vst [vmem:[%s182 + $0x5c] sm:$0x1] %v402
        %v404 = vld [vmem:[%s182 + $0x60] sm:$0xf]
        %v405 = vsel %vm331, %v305, %v404
        %406 = vst [vmem:[%s182 + $0x60] sm:$0xf] %v405
        %v407 = vld [vmem:[%s182 + $0x64] sm:$0x1]
        %v408 = vsel %vm223, %v306, %v407
        %409 = vst [vmem:[%s182 + $0x64] sm:$0x1] %v408
        %v410 = vld [vmem:[%s182 + $0x68] sm:$0xf]
        %v411 = vsel %vm331, %v313, %v410
        %412 = vst [vmem:[%s182 + $0x68] sm:$0xf] %v411
        %v413 = vld [vmem:[%s182 + $0x6c] sm:$0x1]
        %v414 = vsel %vm223, %v314, %v413
        %415 = vst [vmem:[%s182 + $0x6c] sm:$0x1] %v414
        %v416 = vld [vmem:[%s182 + $0x70] sm:$0xf]
        %v417 = vsel %vm331, %v321, %v416
        %418 = vst [vmem:[%s182 + $0x70] sm:$0xf] %v417
        %v419 = vld [vmem:[%s182 + $0x74] sm:$0x1]
        %v420 = vsel %vm223, %v322, %v419
        %421 = vst [vmem:[%s182 + $0x74] sm:$0x1] %v420
        %v422 = vld [vmem:[%s182 + $0x78] sm:$0xf]
        %v423 = vsel %vm331, %v305, %v422
        %424 = vst [vmem:[%s182 + $0x78] sm:$0xf] %v423
        %v425 = vld [vmem:[%s182 + $0x7c] sm:$0x1]
        %v426 = vsel %vm223, %v306, %v425
        %427 = vst [vmem:[%s182 + $0x7c] sm:$0x1] %v426
        %v428 = vld [vmem:[%s182 + $0x80] sm:$0xf]
        %v429 = vsel %vm331, %v313, %v428
        %430 = vst [vmem:[%s182 + $0x80] sm:$0xf] %v429
        %v431 = vld [vmem:[%s182 + $0x84] sm:$0x1]
        %v432 = vsel %vm223, %v314, %v431
        %433 = vst [vmem:[%s182 + $0x84] sm:$0x1] %v432
        %v434 = vld [vmem:[%s182 + $0x88] sm:$0xf]
        %v435 = vsel %vm331, %v321, %v434
        %436 = vst [vmem:[%s182 + $0x88] sm:$0xf] %v435
        %v437 = vld [vmem:[%s182 + $0x8c] sm:$0x1]
        %v438 = vsel %vm223, %v322, %v437
        %439 = vst [vmem:[%s182 + $0x8c] sm:$0x1] %v438
        %v440 = vld [vmem:[%s182 + $0x90] sm:$0xf]
        %v441 = vsel %vm331, %v305, %v440
        %442 = vst [vmem:[%s182 + $0x90] sm:$0xf] %v441
        %v443 = vld [vmem:[%s182 + $0x94] sm:$0x1]
        %v444 = vsel %vm223, %v306, %v443
        %445 = vst [vmem:[%s182 + $0x94] sm:$0x1] %v444
        %v446 = vld [vmem:[%s182 + $0x98] sm:$0xf]
        %v447 = vsel %vm331, %v313, %v446
        %448 = vst [vmem:[%s182 + $0x98] sm:$0xf] %v447
        %v449 = vld [vmem:[%s182 + $0x9c] sm:$0x1]
        %v450 = vsel %vm223, %v314, %v449
        %451 = vst [vmem:[%s182 + $0x9c] sm:$0x1] %v450
        %v452 = vld [vmem:[%s182 + $0xa0] sm:$0xf]
        %v453 = vsel %vm331, %v321, %v452
        %454 = vst [vmem:[%s182 + $0xa0] sm:$0xf] %v453
        %v455 = vld [vmem:[%s182 + $0xa4] sm:$0x1]
        %v456 = vsel %vm223, %v322, %v455
        %457 = vst [vmem:[%s182 + $0xa4] sm:$0x1] %v456
        %v458 = vld [vmem:[%s182 + $0xa8] sm:$0xf]
        %v459 = vsel %vm331, %v305, %v458
        %460 = vst [vmem:[%s182 + $0xa8] sm:$0xf] %v459
        %v461 = vld [vmem:[%s182 + $0xac] sm:$0x1]
        %v462 = vsel %vm223, %v306, %v461
        %463 = vst [vmem:[%s182 + $0xac] sm:$0x1] %v462
        %v464 = vld [vmem:[%s182 + $0xb0] sm:$0xf]
        %v465 = vsel %vm331, %v313, %v464
        %466 = vst [vmem:[%s182 + $0xb0] sm:$0xf] %v465
        %v467 = vld [vmem:[%s182 + $0xb4] sm:$0x1]
        %v468 = vsel %vm223, %v314, %v467
        %469 = vst [vmem:[%s182 + $0xb4] sm:$0x1] %v468
        %v470 = vld [vmem:[%s182 + $0xb8] sm:$0xf]
        %v471 = vsel %vm331, %v321, %v470
        %472 = vst [vmem:[%s182 + $0xb8] sm:$0xf] %v471
        %v473 = vld [vmem:[%s182 + $0xbc] sm:$0x1]
        %v474 = vsel %vm223, %v322, %v473
        %475 = vst [vmem:[%s182 + $0xbc] sm:$0x1] %v474
        %v476 = vld [vmem:[%s194] sm:$0xf]
        %v477 = vld [vmem:[%s194 + $0x4] sm:$0xf]
        %v478 = vld [vmem:[%s194 + $0x8] sm:$0xf]
        %v479 = vld [vmem:[%s194 + $0xc] sm:$0xf]
        %v480 = vld [vmem:[%s194 + $0x10] sm:$0xf]
        %v481 = vld [vmem:[%s194 + $0x14] sm:$0xf]
        %v482 = vld [vmem:[%s194 + $0x18] sm:$0xf]
        %v483 = vld [vmem:[%s194 + $0x1c] sm:$0xf]
        %v484 = vld [vmem:[%s194 + $0x20] sm:$0xf]
        %v485 = vld [vmem:[%s194 + $0x24] sm:$0xf]
        %v486 = vld [vmem:[%s194 + $0x28] sm:$0xf]
        %v487 = vld [vmem:[%s194 + $0x2c] sm:$0xf]
        %v488 = vld [vmem:[%s194 + $0x30] sm:$0xf]
        %v489 = vld [vmem:[%s194 + $0x34] sm:$0xf]
        %v490 = vld [vmem:[%s194 + $0x38] sm:$0xf]
        %v491 = vld [vmem:[%s194 + $0x3c] sm:$0xf]
        %v492 = vld [vmem:[%s194 + $0x40] sm:$0xf]
        %v493 = vld [vmem:[%s194 + $0x44] sm:$0xf]
        %v494 = vld [vmem:[%s194 + $0x48] sm:$0xf]
        %v495 = vld [vmem:[%s194 + $0x4c] sm:$0xf]
        %v496 = vld [vmem:[%s194 + $0x50] sm:$0xf]
        %v497 = vld [vmem:[%s194 + $0x54] sm:$0xf]
        %v498 = vld [vmem:[%s194 + $0x58] sm:$0xf]
        %v499 = vld [vmem:[%s194 + $0x5c] sm:$0xf]
        %v501 = vshrl.u32 %v476, 16
        %v503 = vrot.slane %v501, 7
        %v504 = vshll.u32 %v476, 16
        %v506 = vor.u32 %v503, %v504
        %v508 = vshrl.u32 %v477, 16
        %v510 = vrot.slane %v508, 7
        %v511 = vshll.u32 %v477, 16
        %v513 = vor.u32 %v510, %v511
        %v515 = vshrl.u32 %v478, 16
        %v517 = vrot.slane %v515, 7
        %v518 = vshll.u32 %v478, 16
        %v520 = vor.u32 %v517, %v518
        %v522 = vshrl.u32 %v479, 16
        %v524 = vrot.slane %v522, 7
        %v525 = vshll.u32 %v479, 16
        %v527 = vor.u32 %v524, %v525
        %v529 = vshrl.u32 %v480, 16
        %v531 = vrot.slane %v529, 7
        %v532 = vshll.u32 %v480, 16
        %v534 = vor.u32 %v531, %v532
        %v536 = vshrl.u32 %v481, 16
        %v538 = vrot.slane %v536, 7
        %v539 = vshll.u32 %v481, 16
        %v541 = vor.u32 %v538, %v539
        %v543 = vshrl.u32 %v482, 16
        %v545 = vrot.slane %v543, 7
        %v546 = vshll.u32 %v482, 16
        %v548 = vor.u32 %v545, %v546
        %v550 = vshrl.u32 %v483, 16
        %v552 = vrot.slane %v550, 7
        %v553 = vshll.u32 %v483, 16
        %v555 = vor.u32 %v552, %v553
        %v557 = vshrl.u32 %v484, 16
        %v559 = vrot.slane %v557, 7
        %v560 = vshll.u32 %v484, 16
        %v562 = vor.u32 %v559, %v560
        %v564 = vshrl.u32 %v485, 16
        %v566 = vrot.slane %v564, 7
        %v567 = vshll.u32 %v485, 16
        %v569 = vor.u32 %v566, %v567
        %v571 = vshrl.u32 %v486, 16
        %v573 = vrot.slane %v571, 7
        %v574 = vshll.u32 %v486, 16
        %v576 = vor.u32 %v573, %v574
        %v578 = vshrl.u32 %v487, 16
        %v580 = vrot.slane %v578, 7
        %v581 = vshll.u32 %v487, 16
        %v583 = vor.u32 %v580, %v581
        %v585 = vshrl.u32 %v488, 16
        %v587 = vrot.slane %v585, 7
        %v588 = vshll.u32 %v488, 16
        %v590 = vor.u32 %v587, %v588
        %v592 = vshrl.u32 %v489, 16
        %v594 = vrot.slane %v592, 7
        %v595 = vshll.u32 %v489, 16
        %v597 = vor.u32 %v594, %v595
        %v599 = vshrl.u32 %v490, 16
        %v601 = vrot.slane %v599, 7
        %v602 = vshll.u32 %v490, 16
        %v604 = vor.u32 %v601, %v602
        %v606 = vshrl.u32 %v491, 16
        %v608 = vrot.slane %v606, 7
        %v609 = vshll.u32 %v491, 16
        %v611 = vor.u32 %v608, %v609
        %v613 = vshrl.u32 %v492, 16
        %v615 = vrot.slane %v613, 7
        %v616 = vshll.u32 %v492, 16
        %v618 = vor.u32 %v615, %v616
        %v620 = vshrl.u32 %v493, 16
        %v622 = vrot.slane %v620, 7
        %v623 = vshll.u32 %v493, 16
        %v625 = vor.u32 %v622, %v623
        %v627 = vshrl.u32 %v494, 16
        %v629 = vrot.slane %v627, 7
        %v630 = vshll.u32 %v494, 16
        %v632 = vor.u32 %v629, %v630
        %v634 = vshrl.u32 %v495, 16
        %v636 = vrot.slane %v634, 7
        %v637 = vshll.u32 %v495, 16
        %v639 = vor.u32 %v636, %v637
        %v641 = vshrl.u32 %v496, 16
        %v643 = vrot.slane %v641, 7
        %v644 = vshll.u32 %v496, 16
        %v646 = vor.u32 %v643, %v644
        %v648 = vshrl.u32 %v497, 16
        %v650 = vrot.slane %v648, 7
        %v651 = vshll.u32 %v497, 16
        %v653 = vor.u32 %v650, %v651
        %v655 = vshrl.u32 %v498, 16
        %v657 = vrot.slane %v655, 7
        %v658 = vshll.u32 %v498, 16
        %v660 = vor.u32 %v657, %v658
        %v662 = vshrl.u32 %v499, 16
        %v664 = vrot.slane %v662, 7
        %v665 = vshll.u32 %v499, 16
        %v667 = vor.u32 %v664, %v665
        %v692 = vld [vmem:[%s182 + $0x4] sm:$0xf]
        %v693 = vsel %vm331, %v506, %v692
        %694 = vst [vmem:[%s182 + $0x4] sm:$0xf] %v693
        %v695 = vld [vmem:[%s182 + $0xc] sm:$0xf]
        %v696 = vsel %vm331, %v513, %v695
        %697 = vst [vmem:[%s182 + $0xc] sm:$0xf] %v696
        %v698 = vld [vmem:[%s182 + $0x14] sm:$0xf]
        %v699 = vsel %vm331, %v520, %v698
        %700 = vst [vmem:[%s182 + $0x14] sm:$0xf] %v699
        %v701 = vld [vmem:[%s182 + $0x1c] sm:$0xf]
        %v702 = vsel %vm331, %v527, %v701
        %703 = vst [vmem:[%s182 + $0x1c] sm:$0xf] %v702
        %v704 = vld [vmem:[%s182 + $0x24] sm:$0xf]
        %v705 = vsel %vm331, %v534, %v704
        %706 = vst [vmem:[%s182 + $0x24] sm:$0xf] %v705
        %v707 = vld [vmem:[%s182 + $0x2c] sm:$0xf]
        %v708 = vsel %vm331, %v541, %v707
        %709 = vst [vmem:[%s182 + $0x2c] sm:$0xf] %v708
        %v710 = vld [vmem:[%s182 + $0x34] sm:$0xf]
        %v711 = vsel %vm331, %v548, %v710
        %712 = vst [vmem:[%s182 + $0x34] sm:$0xf] %v711
        %v713 = vld [vmem:[%s182 + $0x3c] sm:$0xf]
        %v714 = vsel %vm331, %v555, %v713
        %715 = vst [vmem:[%s182 + $0x3c] sm:$0xf] %v714
        %v716 = vld [vmem:[%s182 + $0x44] sm:$0xf]
        %v717 = vsel %vm331, %v562, %v716
        %718 = vst [vmem:[%s182 + $0x44] sm:$0xf] %v717
        %v719 = vld [vmem:[%s182 + $0x4c] sm:$0xf]
        %v720 = vsel %vm331, %v569, %v719
        %721 = vst [vmem:[%s182 + $0x4c] sm:$0xf] %v720
        %v722 = vld [vmem:[%s182 + $0x54] sm:$0xf]
        %v723 = vsel %vm331, %v576, %v722
        %724 = vst [vmem:[%s182 + $0x54] sm:$0xf] %v723
        %v725 = vld [vmem:[%s182 + $0x5c] sm:$0xf]
        %v726 = vsel %vm331, %v583, %v725
        %727 = vst [vmem:[%s182 + $0x5c] sm:$0xf] %v726
        %v728 = vld [vmem:[%s182 + $0x64] sm:$0xf]
        %v729 = vsel %vm331, %v590, %v728
        %730 = vst [vmem:[%s182 + $0x64] sm:$0xf] %v729
        %v731 = vld [vmem:[%s182 + $0x6c] sm:$0xf]
        %v732 = vsel %vm331, %v597, %v731
        %733 = vst [vmem:[%s182 + $0x6c] sm:$0xf] %v732
        %v734 = vld [vmem:[%s182 + $0x74] sm:$0xf]
        %v735 = vsel %vm331, %v604, %v734
        %736 = vst [vmem:[%s182 + $0x74] sm:$0xf] %v735
        %v737 = vld [vmem:[%s182 + $0x7c] sm:$0xf]
        %v738 = vsel %vm331, %v611, %v737
        %739 = vst [vmem:[%s182 + $0x7c] sm:$0xf] %v738
        %v740 = vld [vmem:[%s182 + $0x84] sm:$0xf]
        %v741 = vsel %vm331, %v618, %v740
        %742 = vst [vmem:[%s182 + $0x84] sm:$0xf] %v741
        %v743 = vld [vmem:[%s182 + $0x8c] sm:$0xf]
        %v744 = vsel %vm331, %v625, %v743
        %745 = vst [vmem:[%s182 + $0x8c] sm:$0xf] %v744
        %v746 = vld [vmem:[%s182 + $0x94] sm:$0xf]
        %v747 = vsel %vm331, %v632, %v746
        %748 = vst [vmem:[%s182 + $0x94] sm:$0xf] %v747
        %v749 = vld [vmem:[%s182 + $0x9c] sm:$0xf]
        %v750 = vsel %vm331, %v639, %v749
        %751 = vst [vmem:[%s182 + $0x9c] sm:$0xf] %v750
        %v752 = vld [vmem:[%s182 + $0xa4] sm:$0xf]
        %v753 = vsel %vm331, %v646, %v752
        %754 = vst [vmem:[%s182 + $0xa4] sm:$0xf] %v753
        %v755 = vld [vmem:[%s182 + $0xac] sm:$0xf]
        %v756 = vsel %vm331, %v653, %v755
        %757 = vst [vmem:[%s182 + $0xac] sm:$0xf] %v756
        %v758 = vld [vmem:[%s182 + $0xb4] sm:$0xf]
        %v759 = vsel %vm331, %v660, %v758
        %760 = vst [vmem:[%s182 + $0xb4] sm:$0xf] %v759
        %v761 = vld [vmem:[%s182 + $0xbc] sm:$0xf]
        %v762 = vsel %vm331, %v667, %v761
        %763 = vst [vmem:[%s182 + $0xbc] sm:$0xf] %v762
        %s764 = sand.u32 %s98, 1
        %s765 = scalar_lea.sflag [#allocation3], %s764
        %s766 = sand.u32 %s98, 1
        %s767 = smul.addr %s766, 192
        %s768 = scalar_lea.vmem [#allocation2], %s767
        // Predicated region
        $region33: #{tpu_custom_call.1} parent=31 // pred_check
          %p769 = pneg %p108
        $region34: #{tpu_custom_call.1} parent=31 // pred_check_branch
          %771 = sbr.rel (%p769) target = $region36
        $region35: #{tpu_custom_call.1} parent=31 // pred_region
          %s772 = smul.u32 8, %s17
          %774 = vsyncadd %s765, 0
          %s775 = smul.addr %s772, 6
          %s776 = smul.addr %s775, 4
          %s777 = scalar_lea.hbm %s3, %s776
          %s778 = sshll.u32 %s768, 4
          %s779 = int_to_ptr.vmem [resolvable:$true] %s778
          %s780 = sshll.u32 %s777, 4
          %s781 = int_to_ptr.hbm [resolvable:$true] %s780
          %786 = dma.vmem_to_hbm [thread:$0]  %s779, 3072, %s781, %s765, 64, 64, 4
        $region36: #{tpu_custom_call.1} parent=31 // pred_fallthru
          _
      $region32: #{tpu_custom_call.1} parent=5 // pred_fallthru
        _
      %p787 = scmp.le.s32.totalorder 2, %s12
      // Predicated region
      $region37: #{tpu_custom_call.1} parent=5 // pred_check
        %p788 = pneg %p787
      $region38: #{tpu_custom_call.1} parent=5 // pred_check_branch
        %790 = sbr.rel (%p788) target = $region40
      $region39: #{tpu_custom_call.1} parent=5 // pred_region
        %s791 = ssub.s32 %s12, 2
        // Predicated region
        $region41: #{tpu_custom_call.1} parent=39 // pred_check
          %p792 = pneg %p114
        $region42: #{tpu_custom_call.1} parent=39 // pred_check_branch
          %794 = sbr.rel (%p792) target = $region44
        $region43: #{tpu_custom_call.1} parent=39 // pred_region
          %s795 = sand.u32 %s99, 1
          %s796 = scalar_lea.sflag [#allocation3], %s795
          %s797 = sand.u32 %s99, 1
          %s798 = smul.addr %s797, 192
          %s799 = scalar_lea.vmem [#allocation2], %s798
          %801 = dma.done %s796, 3072
        $region44: #{tpu_custom_call.1} parent=39 // pred_fallthru
          _
      $region40: #{tpu_custom_call.1} parent=5 // pred_fallthru
        _
    $region6: #{tpu_custom_call.1} parent=1 // loop_footer
      %s16 = sadd.s32 1, %s12
    $region7: #{tpu_custom_call.1} parent=1 // loop_footer_branch
      %11 = sbr.rel target = $region3
    $region8: #{tpu_custom_call.1} parent=1 // loop_exit
      _
    %802 = vsyncpa [#allocation3], 1
    %s803 = scalar_lea.sflag [#allocation3], 1
    %804 = vsyncpa %s803, 1

</llo_original>
